<compile_context>
chip_gen: v7x
topology: tpu7x:2x2x1
jax: 0.10.0
libtpu: 0.0.40
codegen_flags: <defaults>
</compile_context>

<pallas_src>
import functools

import jax
import jax.numpy as jnp
from jax.experimental import pallas as pl
from jax.experimental.pallas import tpu as pltpu

LANE = 128
_VMEM_TILE_BUDGET = 40 * 1024 * 1024   # double-buffered working-set cap (v7x-safe)
_VMEM_LIMIT_BYTES = 56 * 1024 * 1024   # scoped VMEM limit handed to Mosaic


def _round_up(x, m):
    return (x + m - 1) // m * m


# ---------------------------------------------------------------------------
# Kernels. Weights are pre-transposed/padded: W^T is (in_p, out_p), so the MXU
# sees a clean (B, K) @ (K, N) contraction. Factorized-noise tile:
# W_eps^T = eps_in (tk, 1) * eps_out (1, tn), combined on the VPU (has slack).
# ---------------------------------------------------------------------------
def _noisy_kernel_full_k(x_ref, wmu_ref, wsig_ref, ein_ref, eout_ref,
                         bmu_ref, bsig_ref, beps_ref, o_ref):
    # Whole K dimension is VMEM-resident: single pass, no accumulator.
    w_eff = wmu_ref[...] + wsig_ref[...] * (ein_ref[...] * eout_ref[...])
    acc = jnp.dot(x_ref[...], w_eff, preferred_element_type=jnp.float32)
    b_eff = bmu_ref[...] + bsig_ref[...] * beps_ref[...]
    o_ref[...] = (acc + b_eff).astype(o_ref.dtype)


def _noisy_kernel_red_k(x_ref, wmu_ref, wsig_ref, ein_ref, eout_ref,
                        bmu_ref, bsig_ref, beps_ref, o_ref):
    # Fallback for very large in_features: reduce over grid axis 1 (last,
    # "arbitrary"), accumulating directly into the f32 output block whose
    # index map ignores k (so it stays resident across the reduction).
    k = pl.program_id(1)

    @pl.when(k == 0)
    def _():
        o_ref[...] = jnp.zeros_like(o_ref)

    w_eff = wmu_ref[...] + wsig_ref[...] * (ein_ref[...] * eout_ref[...])
    o_ref[...] += jnp.dot(x_ref[...], w_eff, preferred_element_type=jnp.float32)

    @pl.when(k == pl.num_programs(1) - 1)
    def _():
        o_ref[...] += bmu_ref[...] + bsig_ref[...] * beps_ref[...]


# ---------------------------------------------------------------------------
# Init-time parameter preparation (pad / transpose / cast once, not per call).
# ---------------------------------------------------------------------------
def prepare_noisy_params(w_mu, w_sigma, eps_in, eps_out, b_mu, b_sigma, b_eps,
                         *, weights_dtype=jnp.float32):
    out_f, in_f = w_mu.shape
    in_p = _round_up(in_f, LANE)
    out_p = _round_up(out_f, LANE)

    def pad2(a, rows, cols):
        return jnp.pad(a, ((0, rows - a.shape[0]), (0, cols - a.shape[1])))

    return dict(
        wmu_t=pad2(w_mu.T.astype(weights_dtype), in_p, out_p),
        wsig_t=pad2(w_sigma.T.astype(weights_dtype), in_p, out_p),
        ein=pad2(eps_in.reshape(in_f, 1).astype(jnp.float32), in_p, 1),
        eout=pad2(eps_out.reshape(1, out_f).astype(jnp.float32), 1, out_p),
        bmu=pad2(b_mu.reshape(1, out_f).astype(jnp.float32), 1, out_p),
        bsig=pad2(b_sigma.reshape(1, out_f).astype(jnp.float32), 1, out_p),
        beps=pad2(b_eps.reshape(1, out_f).astype(jnp.float32), 1, out_p),
        in_features=in_f, out_features=out_f,
    )


def _select_tiling(B, in_p, out_p, w_bytes):
    tn_cands = [t for t in (1024, 512, 256, 128) if out_p % t == 0]
    # Prefer >=2 output tiles so v7x's two TensorCores both stream weights.
    pref = [t for t in tn_cands if out_p // t >= 2] or tn_cands

    def ws_full_k(tn):
        return (2 * 2 * in_p * tn * w_bytes        # two weight streams, 2-buffered
                + 2 * B * in_p * 4                 # resident x (count 2 bufs)
                + 2 * B * tn * 4                   # output block
                + 2 * (in_p + 4 * tn) * 4)         # eps / bias streams

    for tn in pref:                                 # collapsed-K path (preferred)
        if ws_full_k(tn) <= _VMEM_TILE_BUDGET:
            return tn, in_p

    def ws_red_k(tn, tk):
        return (2 * 2 * tk * tn * w_bytes + 2 * B * tk * 4 + 2 * B * tn * 4
                + 2 * (tk + 4 * tn) * 4)

    for tn in pref:                                 # K-reduction fallback
        for tk in (2048, 1024, 512, 256, 128):
            if in_p % tk == 0 and ws_red_k(tn, tk) <= _VMEM_TILE_BUDGET:
                return tn, tk
    return 128, 128


def noisy_layer_forward(x, params):
    wmu_t, wsig_t = params["wmu_t"], params["wsig_t"]
    ein, eout = params["ein"], params["eout"]
    bmu, bsig, beps = params["bmu"], params["bsig"], params["beps"]
    in_f, out_f = params["in_features"], params["out_features"]

    B = x.shape[0]
    in_p, out_p = wmu_t.shape
    w_bytes = jnp.dtype(wmu_t.dtype).itemsize

    # Only the (tiny) activation is padded per call.
    xp = jnp.pad(x.astype(jnp.float32), ((0, 0), (0, in_p - in_f)))

    tn, tk = _select_tiling(B, in_p, out_p, w_bytes)

    cost = pl.CostEstimate(
        flops=2 * B * in_p * out_p,
        transcendentals=0,
        bytes_accessed=(2 * in_p * out_p * w_bytes           # weight streams
                        + 4 * (B * in_p + B * out_p)          # x + out
                        + 4 * (in_p + 4 * out_p)))            # eps + biases

    if tk == in_p:
        grid = (out_p // tn,)
        kernel = _noisy_kernel_full_k
        in_specs = [
            pl.BlockSpec((B, in_p), lambda j: (0, 0)),      # x (resident)
            pl.BlockSpec((in_p, tn), lambda j: (0, j)),     # W_mu^T
            pl.BlockSpec((in_p, tn), lambda j: (0, j)),     # W_sigma^T
            pl.BlockSpec((in_p, 1), lambda j: (0, 0)),      # eps_in column
            pl.BlockSpec((1, tn), lambda j: (0, j)),        # eps_out row
            pl.BlockSpec((1, tn), lambda j: (0, j)),        # b_mu
            pl.BlockSpec((1, tn), lambda j: (0, j)),        # b_sigma
            pl.BlockSpec((1, tn), lambda j: (0, j)),        # b_eps
        ]
        out_spec = pl.BlockSpec((B, tn), lambda j: (0, j))
        dim_sem = ("parallel",)
    else:
        grid = (out_p // tn, in_p // tk)                     # reduction axis last
        kernel = _noisy_kernel_red_k
        in_specs = [
            pl.BlockSpec((B, tk), lambda j, k: (0, k)),
            pl.BlockSpec((tk, tn), lambda j, k: (k, j)),
            pl.BlockSpec((tk, tn), lambda j, k: (k, j)),
            pl.BlockSpec((tk, 1), lambda j, k: (k, 0)),
            pl.BlockSpec((1, tn), lambda j, k: (0, j)),
            pl.BlockSpec((1, tn), lambda j, k: (0, j)),
            pl.BlockSpec((1, tn), lambda j, k: (0, j)),
            pl.BlockSpec((1, tn), lambda j, k: (0, j)),
        ]
        out_spec = pl.BlockSpec((B, tn), lambda j, k: (0, j))
        dim_sem = ("parallel", "arbitrary")

    out_padded = pl.pallas_call(
        kernel,
        out_shape=jax.ShapeDtypeStruct((B, out_p), jnp.float32),
        grid_spec=pltpu.PrefetchScalarGridSpec(
            num_scalar_prefetch=0,
            grid=grid,
            in_specs=in_specs,
            out_specs=out_spec,
        ),
        compiler_params=pltpu.CompilerParams(
            dimension_semantics=dim_sem,
            vmem_limit_bytes=_VMEM_LIMIT_BYTES),
        cost_estimate=cost,
    )(xp, wmu_t, wsig_t, ein, eout, bmu, bsig, beps)

    return out_padded[:, :out_f]


# ---------------------------------------------------------------------------
# Parameter / noise init mirroring the PyTorch module (host-side jax.random).
# ---------------------------------------------------------------------------
def scale_noise(key, size):
    # torch: x = randn(size); return sign(x) * sqrt(|x|)
    x = jax.random.normal(key, (size,), dtype=jnp.float32)
    return jnp.sign(x) * jnp.sqrt(jnp.abs(x))


def init_noisy_layer_raw(key, in_features, out_features, std_init=0.5):
    k_wmu, k_bmu, k_ein, k_eout = jax.random.split(key, 4)
    mu_range = 1.0 / (in_features ** 0.5)
    sigma_val = std_init / (in_features ** 0.5)

    w_mu = jax.random.uniform(k_wmu, (out_features, in_features),
                              minval=-mu_range, maxval=mu_range,
                              dtype=jnp.float32)
    w_sigma = jnp.full((out_features, in_features), sigma_val, jnp.float32)
    b_mu = jax.random.uniform(k_bmu, (out_features,),
                              minval=-mu_range, maxval=mu_range,
                              dtype=jnp.float32)
    b_sigma = jnp.full((out_features,), sigma_val, jnp.float32)

    eps_in = scale_noise(k_ein, in_features)       # (in,)
    eps_out = scale_noise(k_eout, out_features)    # (out,)
    # W_eps = outer(eps_out, eps_in) is never materialized.
    return dict(w_mu=w_mu, w_sigma=w_sigma, eps_in=eps_in, eps_out=eps_out,
                b_mu=b_mu, b_sigma=b_sigma, b_eps=eps_out)


if __name__ == "__main__":
    key = jax.random.PRNGKey(0)

    # (batch, in_features, out_features, weight streaming dtype, tolerance)
    checks = [
        (8, 32, 64, jnp.float32, 1e-5),     # module's intended small use
        (8, 256, 384, jnp.float32, 1e-5),   # multi-out-tile path
        (8, 256, 384, jnp.bfloat16, 1e-3),  # bf16 weight streaming (half HBM traffic)
    ]
    for B, in_features, out_features, wdt, tol in checks:
        key, k_params, k_x = jax.random.split(key, 3)
        raw = init_noisy_layer_raw(k_params, in_features, out_features,
                                   std_init=0.5)
        params = prepare_noisy_params(**raw, weights_dtype=wdt)
        x = jax.random.normal(k_x, (B, in_features), dtype=jnp.float32)

        out = noisy_layer_forward(x, params)
        jax.block_until_ready(out)

        # Plain-JAX reference (same math as F.linear with noisy params);
        # mirror the stored weight dtype so the bf16 check stays tight.
        w_mu = raw["w_mu"].astype(wdt).astype(jnp.float32)
        w_sigma = raw["w_sigma"].astype(wdt).astype(jnp.float32)
        w_eps = jnp.outer(raw["eps_out"], raw["eps_in"])
        ref = x @ (w_mu + w_sigma * w_eps).T + (raw["b_mu"]
                                                + raw["b_sigma"] * raw["b_eps"])
        assert out.shape == (B, out_features)
        assert jnp.allclose(out, ref, atol=tol, rtol=tol), (
            f"mismatch B={B} in={in_features} out={out_features} dtype={wdt}")

    print("KERNEL_OK")
</pallas_src>

<mosaic_0001>
module attributes {stable_mosaic.version = 11 : i64} {
  func.func @_noisy_kernel_full_k(%arg0: i32, %arg1: memref<8x128xf32, #tpu.memory_space<vmem>>, %arg2: memref<128x128xf32, #tpu.memory_space<vmem>>, %arg3: memref<128x128xf32, #tpu.memory_space<vmem>>, %arg4: memref<128x1xf32, #tpu.memory_space<vmem>>, %arg5: memref<1x128xf32, #tpu.memory_space<vmem>>, %arg6: memref<1x128xf32, #tpu.memory_space<vmem>>, %arg7: memref<1x128xf32, #tpu.memory_space<vmem>>, %arg8: memref<1x128xf32, #tpu.memory_space<vmem>>, %arg9: memref<8x128xf32, #tpu.memory_space<vmem>>) attributes {dimension_semantics = [#tpu.dimension_semantics<parallel>], iteration_bounds = array<i64: 1>, scalar_prefetch = 0 : i64, scratch_operands = 0 : i64, tpu.core_type = #tpu.core_type<tc>, window_params = [{pipeline_mode = #tpu.pipeline_mode<synchronous>, transform_indices = @transform_0, window_bounds = array<i64: 8, 128>}, {transform_indices = @transform_1, window_bounds = array<i64: 128, 128>}, {transform_indices = @transform_2, window_bounds = array<i64: 128, 128>}, {pipeline_mode = #tpu.pipeline_mode<synchronous>, transform_indices = @transform_3, window_bounds = array<i64: 128, 1>}, {transform_indices = @transform_4, window_bounds = array<i64: 1, 128>}, {transform_indices = @transform_5, window_bounds = array<i64: 1, 128>}, {transform_indices = @transform_6, window_bounds = array<i64: 1, 128>}, {transform_indices = @transform_7, window_bounds = array<i64: 1, 128>}, {transform_indices = @transform_8, window_bounds = array<i64: 8, 128>}]} {
    %c0 = arith.constant 0 : index
    %c0_0 = arith.constant 0 : index
    %0 = vector.load %arg2[%c0, %c0_0] : memref<128x128xf32, #tpu.memory_space<vmem>>, vector<128x128xf32>
    %c0_1 = arith.constant 0 : index
    %c0_2 = arith.constant 0 : index
    %1 = vector.load %arg3[%c0_1, %c0_2] : memref<128x128xf32, #tpu.memory_space<vmem>>, vector<128x128xf32>
    %c0_3 = arith.constant 0 : index
    %c0_4 = arith.constant 0 : index
    %2 = vector.load %arg4[%c0_3, %c0_4] : memref<128x1xf32, #tpu.memory_space<vmem>>, vector<128x1xf32>
    %c0_5 = arith.constant 0 : index
    %c0_6 = arith.constant 0 : index
    %3 = vector.load %arg5[%c0_5, %c0_6] : memref<1x128xf32, #tpu.memory_space<vmem>>, vector<1x128xf32>
    %4 = vector.broadcast %2 : vector<128x1xf32> to vector<128x128xf32>
    %5 = vector.broadcast %3 : vector<1x128xf32> to vector<128x128xf32>
    %6 = arith.mulf %4, %5 : vector<128x128xf32>
    %7 = arith.mulf %1, %6 : vector<128x128xf32>
    %8 = arith.addf %0, %7 : vector<128x128xf32>
    %c0_7 = arith.constant 0 : index
    %c0_8 = arith.constant 0 : index
    %9 = vector.load %arg1[%c0_7, %c0_8] : memref<8x128xf32, #tpu.memory_space<vmem>>, vector<8x128xf32>
    %cst = arith.constant dense<0.000000e+00> : vector<8x128xf32>
    %10 = tpu.matmul %9, %8, %cst {dimension_numbers = #tpu.dot_dimension_numbers<[1], [0], [0], [1], [0, 0, 1, 1], [], []>} : vector<8x128xf32>, vector<128x128xf32>, vector<8x128xf32> -> vector<8x128xf32>
    %c0_9 = arith.constant 0 : index
    %c0_10 = arith.constant 0 : index
    %11 = vector.load %arg6[%c0_9, %c0_10] : memref<1x128xf32, #tpu.memory_space<vmem>>, vector<1x128xf32>
    %c0_11 = arith.constant 0 : index
    %c0_12 = arith.constant 0 : index
    %12 = vector.load %arg7[%c0_11, %c0_12] : memref<1x128xf32, #tpu.memory_space<vmem>>, vector<1x128xf32>
    %c0_13 = arith.constant 0 : index
    %c0_14 = arith.constant 0 : index
    %13 = vector.load %arg8[%c0_13, %c0_14] : memref<1x128xf32, #tpu.memory_space<vmem>>, vector<1x128xf32>
    %14 = arith.mulf %12, %13 : vector<1x128xf32>
    %15 = arith.addf %11, %14 : vector<1x128xf32>
    %16 = vector.broadcast %15 : vector<1x128xf32> to vector<8x128xf32>
    %17 = arith.addf %10, %16 : vector<8x128xf32>
    %c0_15 = arith.constant 0 : index
    %c0_16 = arith.constant 0 : index
    %18 = vector.load %arg9[%c0_15, %c0_16] : memref<8x128xf32, #tpu.memory_space<vmem>>, vector<8x128xf32>
    tpu.vector_store %arg9[%c0_15, %c0_16], %17 {strides = array<i32>} : memref<8x128xf32, #tpu.memory_space<vmem>>, vector<8x128xf32>,
    return
  }
  func.func @transform_0(%arg0: i32) -> (i32, i32) {
    %c0_i32 = arith.constant 0 : i32
    %c0_i32_0 = arith.constant 0 : i32
    %c0_i32_1 = arith.constant 0 : i32
    return %c0_i32, %c0_i32_0 : i32, i32
  }
  func.func @transform_1(%arg0: i32) -> (i32, i32) {
    %c0_i32 = arith.constant 0 : i32
    %c0_i32_0 = arith.constant 0 : i32
    return %c0_i32, %arg0 : i32, i32
  }
  func.func @transform_2(%arg0: i32) -> (i32, i32) {
    %c0_i32 = arith.constant 0 : i32
    %c0_i32_0 = arith.constant 0 : i32
    return %c0_i32, %arg0 : i32, i32
  }
  func.func @transform_3(%arg0: i32) -> (i32, i32) {
    %c0_i32 = arith.constant 0 : i32
    %c0_i32_0 = arith.constant 0 : i32
    %c0_i32_1 = arith.constant 0 : i32
    return %c0_i32, %c0_i32_0 : i32, i32
  }
  func.func @transform_4(%arg0: i32) -> (i32, i32) {
    %c0_i32 = arith.constant 0 : i32
    %c0_i32_0 = arith.constant 0 : i32
    return %c0_i32, %arg0 : i32, i32
  }
  func.func @transform_5(%arg0: i32) -> (i32, i32) {
    %c0_i32 = arith.constant 0 : i32
    %c0_i32_0 = arith.constant 0 : i32
    return %c0_i32, %arg0 : i32, i32
  }
  func.func @transform_6(%arg0: i32) -> (i32, i32) {
    %c0_i32 = arith.constant 0 : i32
    %c0_i32_0 = arith.constant 0 : i32
    return %c0_i32, %arg0 : i32, i32
  }
  func.func @transform_7(%arg0: i32) -> (i32, i32) {
    %c0_i32 = arith.constant 0 : i32
    %c0_i32_0 = arith.constant 0 : i32
    return %c0_i32, %arg0 : i32, i32
  }
  func.func @transform_8(%arg0: i32) -> (i32, i32) {
    %c0_i32 = arith.constant 0 : i32
    %c0_i32_0 = arith.constant 0 : i32
    return %c0_i32, %arg0 : i32, i32
  }
}

</mosaic_0001>

<llo_original>
// kernel: tpu_custom_call.1
$region0: #{tpu_custom_call.1}
  #allocation0 [shape = 'u32[]', space=smem, size = 0x4, offset = 0x4, fixed_abs, tag = 'smem constant byte address 0x4 - core index']
  #allocation1 [shape = 'u32[144,128]{1,0:T(1,128)}', space=vmem, size = 0x12000, scoped, tag = 'internal scratch']
  %s0 = inlined_call_operand.hbm [shape: f32[8,128], index: 0, kind: input, shape index: {}]
  %s1 = inlined_call_operand.vmem [shape: f32[128,128], index: 1, kind: input, shape index: {}]
  %s2 = inlined_call_operand.hbm [shape: f32[128,128], index: 2, kind: input, shape index: {}]
  %s3 = inlined_call_operand.vmem [shape: f32[128,1], index: 3, kind: input, shape index: {}]
  %s4 = inlined_call_operand.vmem [shape: f32[1,128], index: 4, kind: input, shape index: {}]
  %s5 = inlined_call_operand.vmem [shape: f32[1,128], index: 5, kind: input, shape index: {}]
  %s6 = inlined_call_operand.vmem [shape: f32[1,128], index: 6, kind: input, shape index: {}]
  %s7 = inlined_call_operand.vmem [shape: f32[1,128], index: 7, kind: input, shape index: {}]
  %s8 = inlined_call_operand.hbm [shape: f32[8,128], index: 8, kind: output, shape index: {}]
  %s9 = sld [smem:[#allocation0]]
  $region50: #{tpu_custom_call.1} parent=0
    _
  %s11 = ssub.s32 1, %s9
  %s12 = scalar_select 0, %s11, %s9
  $region1: #{tpu_custom_call.1} parent=0
    #allocation2 [shape = 'u8[4096]{0}', space=vmem, size = 0x1000, scoped, tag = 'input window, operand 0, single buffered']
    #allocation3 [shape = 's32[1]{0}', space=sflag, size = 0x4, scoped, tag = 'scoped memory for tpu_custom_call.1']
    #allocation4 [shape = 's32[1]{0}', space=sflag, size = 0x4, scoped, tag = 'scoped memory for tpu_custom_call.1']
    #allocation5 [shape = 'u8[65536]{0}', space=vmem, size = 0x10000, scoped, tag = 'input window, operand 2, single buffered']
    #allocation6 [shape = 's32[1]{0}', space=sflag, size = 0x4, scoped, tag = 'scoped memory for tpu_custom_call.1']
    #allocation7 [shape = 'u8[4096]{0}', space=vmem, size = 0x1000, scoped, tag = 'output window, operand 0, single buffered']
    %13 = vsyncpa [#allocation3], 0
    %14 = vsyncpa [#allocation6], 0
    %15 = vsyncpa [#allocation4], 0
    // Predicated region
    $region2: #{tpu_custom_call.1} parent=1 // pred_check
      _
    $region3: #{tpu_custom_call.1} parent=1 // pred_check_branch
      %17 = sbr.rel (0) target = $region5
    $region4: #{tpu_custom_call.1} parent=1 // pred_region
      %s19 = ssub.s32 128, 128
      %20 = vsyncadd [#allocation3], %s19
      %s22 = sshll.u32 [#allocation2], 4
      %s23 = int_to_ptr.vmem [resolvable:$true] %s22
      %25 = dma.hbm_to_vmem [thread:$0]  %s0, 128, %s23, [#allocation3]
    $region5: #{tpu_custom_call.1} parent=1 // pred_fallthru
      _
    // Predicated region
    $region6: #{tpu_custom_call.1} parent=1 // pred_check
      _
    $region7: #{tpu_custom_call.1} parent=1 // pred_check_branch
      %27 = sbr.rel (0) target = $region9
    $region8: #{tpu_custom_call.1} parent=1 // pred_region
      _
    $region9: #{tpu_custom_call.1} parent=1 // pred_fallthru
      _
    // Predicated region
    $region10: #{tpu_custom_call.1} parent=1 // pred_check
      _
    $region11: #{tpu_custom_call.1} parent=1 // pred_check_branch
      %29 = sbr.rel (0) target = $region13
    $region12: #{tpu_custom_call.1} parent=1 // pred_region
      %s31 = ssub.s32 2048, 2048
      %32 = vsyncadd [#allocation6], %s31
      %s33 = sshll.u32 [#allocation5], 4
      %s34 = int_to_ptr.vmem [resolvable:$true] %s33
      %39 = dma.hbm_to_vmem [thread:$0]  %s2, 2048, %s34, [#allocation6], 128, 128, 8
    $region13: #{tpu_custom_call.1} parent=1 // pred_fallthru
      _
    // Predicated region
    $region14: #{tpu_custom_call.1} parent=1 // pred_check
      _
    $region15: #{tpu_custom_call.1} parent=1 // pred_check_branch
      %41 = sbr.rel (0) target = $region17
    $region16: #{tpu_custom_call.1} parent=1 // pred_region
      _
    $region17: #{tpu_custom_call.1} parent=1 // pred_fallthru
      _
    // Predicated region
    $region18: #{tpu_custom_call.1} parent=1 // pred_check
      _
    $region19: #{tpu_custom_call.1} parent=1 // pred_check_branch
      %43 = sbr.rel (0) target = $region21
    $region20: #{tpu_custom_call.1} parent=1 // pred_region
      _
    $region21: #{tpu_custom_call.1} parent=1 // pred_fallthru
      _
    // Predicated region
    $region22: #{tpu_custom_call.1} parent=1 // pred_check
      _
    $region23: #{tpu_custom_call.1} parent=1 // pred_check_branch
      %45 = sbr.rel (0) target = $region25
    $region24: #{tpu_custom_call.1} parent=1 // pred_region
      _
    $region25: #{tpu_custom_call.1} parent=1 // pred_fallthru
      _
    // Predicated region
    $region26: #{tpu_custom_call.1} parent=1 // pred_check
      _
    $region27: #{tpu_custom_call.1} parent=1 // pred_check_branch
      %47 = sbr.rel (0) target = $region29
    $region28: #{tpu_custom_call.1} parent=1 // pred_region
      _
    $region29: #{tpu_custom_call.1} parent=1 // pred_fallthru
      _
    // Predicated region
    $region30: #{tpu_custom_call.1} parent=1 // pred_check
      _
    $region31: #{tpu_custom_call.1} parent=1 // pred_check_branch
      %49 = sbr.rel (0) target = $region33
    $region32: #{tpu_custom_call.1} parent=1 // pred_region
      _
    $region33: #{tpu_custom_call.1} parent=1 // pred_fallthru
      _
    // Predicated region
    $region34: #{tpu_custom_call.1} parent=1 // pred_check
      _
    $region35: #{tpu_custom_call.1} parent=1 // pred_check_branch
      %51 = sbr.rel (0) target = $region37
    $region36: #{tpu_custom_call.1} parent=1 // pred_region
      %52 = dma.done [#allocation3], 128
    $region37: #{tpu_custom_call.1} parent=1 // pred_fallthru
      _
    // Predicated region
    $region38: #{tpu_custom_call.1} parent=1 // pred_check
      _
    $region39: #{tpu_custom_call.1} parent=1 // pred_check_branch
      %54 = sbr.rel (0) target = $region41
    $region40: #{tpu_custom_call.1} parent=1 // pred_region
      %55 = dma.done [#allocation6], 2048
    $region41: #{tpu_custom_call.1} parent=1 // pred_fallthru
      _
    %v56 = vld [vmem:[%s1] sm:$0xff]
    %v57 = vld [vmem:[%s1 + $0x8] sm:$0xff]
    %v58 = vld [vmem:[%s1 + $0x10] sm:$0xff]
    %v59 = vld [vmem:[%s1 + $0x18] sm:$0xff]
    %v60 = vld [vmem:[%s1 + $0x20] sm:$0xff]
    %v61 = vld [vmem:[%s1 + $0x28] sm:$0xff]
    %v62 = vld [vmem:[%s1 + $0x30] sm:$0xff]
    %v63 = vld [vmem:[%s1 + $0x38] sm:$0xff]
    %v64 = vld [vmem:[%s1 + $0x40] sm:$0xff]
    %v65 = vld [vmem:[%s1 + $0x48] sm:$0xff]
    %v66 = vld [vmem:[%s1 + $0x50] sm:$0xff]
    %v67 = vld [vmem:[%s1 + $0x58] sm:$0xff]
    %v68 = vld [vmem:[%s1 + $0x60] sm:$0xff]
    %v69 = vld [vmem:[%s1 + $0x68] sm:$0xff]
    %v70 = vld [vmem:[%s1 + $0x70] sm:$0xff]
    %v71 = vld [vmem:[%s1 + $0x78] sm:$0xff]
    %v72 = vld [vmem:[#allocation5] sm:$0xff]
    %v73 = vld [vmem:[#allocation5 + $0x8] sm:$0xff]
    %v74 = vld [vmem:[#allocation5 + $0x10] sm:$0xff]
    %v75 = vld [vmem:[#allocation5 + $0x18] sm:$0xff]
    %v76 = vld [vmem:[#allocation5 + $0x20] sm:$0xff]
    %v77 = vld [vmem:[#allocation5 + $0x28] sm:$0xff]
    %v78 = vld [vmem:[#allocation5 + $0x30] sm:$0xff]
    %v79 = vld [vmem:[#allocation5 + $0x38] sm:$0xff]
    %v80 = vld [vmem:[#allocation5 + $0x40] sm:$0xff]
    %v81 = vld [vmem:[#allocation5 + $0x48] sm:$0xff]
    %v82 = vld [vmem:[#allocation5 + $0x50] sm:$0xff]
    %v83 = vld [vmem:[#allocation5 + $0x58] sm:$0xff]
    %v84 = vld [vmem:[#allocation5 + $0x60] sm:$0xff]
    %v85 = vld [vmem:[#allocation5 + $0x68] sm:$0xff]
    %v86 = vld [vmem:[#allocation5 + $0x70] sm:$0xff]
    %v87 = vld [vmem:[#allocation5 + $0x78] sm:$0xff]
    %v88 = vld [vmem:[%s3] sm:$0xff]
    %v89 = vld [vmem:[%s3 + $0x8] sm:$0xff]
    %v90 = vld [vmem:[%s3 + $0x10] sm:$0xff]
    %v91 = vld [vmem:[%s3 + $0x18] sm:$0xff]
    %v92 = vld [vmem:[%s3 + $0x20] sm:$0xff]
    %v93 = vld [vmem:[%s3 + $0x28] sm:$0xff]
    %v94 = vld [vmem:[%s3 + $0x30] sm:$0xff]
    %v95 = vld [vmem:[%s3 + $0x38] sm:$0xff]
    %v96 = vld [vmem:[%s3 + $0x40] sm:$0xff]
    %v97 = vld [vmem:[%s3 + $0x48] sm:$0xff]
    %v98 = vld [vmem:[%s3 + $0x50] sm:$0xff]
    %v99 = vld [vmem:[%s3 + $0x58] sm:$0xff]
    %v100 = vld [vmem:[%s3 + $0x60] sm:$0xff]
    %v101 = vld [vmem:[%s3 + $0x68] sm:$0xff]
    %v102 = vld [vmem:[%s3 + $0x70] sm:$0xff]
    %v103 = vld [vmem:[%s3 + $0x78] sm:$0xff]
    %v104 = vld [vmem:[%s4] sm:$0x1]
    %106 = vset.pattern.permute.xlu0 0
    %107 = vperm.xlu0 %106, %v88
    %v108 = vpop.permute.xlu0 %107
    %111 = vset.pattern.permute.xlu0 0
    %112 = vperm.xlu0 %111, %v89
    %v113 = vpop.permute.xlu0 %112
    %116 = vset.pattern.permute.xlu0 0
    %117 = vperm.xlu0 %116, %v90
    %v118 = vpop.permute.xlu0 %117
    %121 = vset.pattern.permute.xlu0 0
    %122 = vperm.xlu0 %121, %v91
    %v123 = vpop.permute.xlu0 %122
    %126 = vset.pattern.permute.xlu0 0
    %127 = vperm.xlu0 %126, %v92
    %v128 = vpop.permute.xlu0 %127
    %131 = vset.pattern.permute.xlu0 0
    %132 = vperm.xlu0 %131, %v93
    %v133 = vpop.permute.xlu0 %132
    %136 = vset.pattern.permute.xlu0 0
    %137 = vperm.xlu0 %136, %v94
    %v138 = vpop.permute.xlu0 %137
    %141 = vset.pattern.permute.xlu0 0
    %142 = vperm.xlu0 %141, %v95
    %v143 = vpop.permute.xlu0 %142
    %146 = vset.pattern.permute.xlu0 0
    %147 = vperm.xlu0 %146, %v96
    %v148 = vpop.permute.xlu0 %147
    %151 = vset.pattern.permute.xlu0 0
    %152 = vperm.xlu0 %151, %v97
    %v153 = vpop.permute.xlu0 %152
    %156 = vset.pattern.permute.xlu0 0
    %157 = vperm.xlu0 %156, %v98
    %v158 = vpop.permute.xlu0 %157
    %161 = vset.pattern.permute.xlu0 0
    %162 = vperm.xlu0 %161, %v99
    %v163 = vpop.permute.xlu0 %162
    %166 = vset.pattern.permute.xlu0 0
    %167 = vperm.xlu0 %166, %v100
    %v168 = vpop.permute.xlu0 %167
    %171 = vset.pattern.permute.xlu0 0
    %172 = vperm.xlu0 %171, %v101
    %v173 = vpop.permute.xlu0 %172
    %176 = vset.pattern.permute.xlu0 0
    %177 = vperm.xlu0 %176, %v102
    %v178 = vpop.permute.xlu0 %177
    %181 = vset.pattern.permute.xlu0 0
    %182 = vperm.xlu0 %181, %v103
    %v183 = vpop.permute.xlu0 %182
    %v186 = vlaneseq
    %v187 = vshrl.u32 %v186, 7
    %v188 = vsub.s32 0, %v187
    %v189 = vrot.slane %v104, %v188
    %v191 = vmul.f32 %v108, %v189
    %v192 = vmul.f32 %v113, %v189
    %v193 = vmul.f32 %v118, %v189
    %v194 = vmul.f32 %v123, %v189
    %v195 = vmul.f32 %v128, %v189
    %v196 = vmul.f32 %v133, %v189
    %v197 = vmul.f32 %v138, %v189
    %v198 = vmul.f32 %v143, %v189
    %v199 = vmul.f32 %v148, %v189
    %v200 = vmul.f32 %v153, %v189
    %v201 = vmul.f32 %v158, %v189
    %v202 = vmul.f32 %v163, %v189
    %v203 = vmul.f32 %v168, %v189
    %v204 = vmul.f32 %v173, %v189
    %v205 = vmul.f32 %v178, %v189
    %v206 = vmul.f32 %v183, %v189
    %v207 = vmul.f32 %v72, %v191
    %v208 = vmul.f32 %v73, %v192
    %v209 = vmul.f32 %v74, %v193
    %v210 = vmul.f32 %v75, %v194
    %v211 = vmul.f32 %v76, %v195
    %v212 = vmul.f32 %v77, %v196
    %v213 = vmul.f32 %v78, %v197
    %v214 = vmul.f32 %v79, %v198
    %v215 = vmul.f32 %v80, %v199
    %v216 = vmul.f32 %v81, %v200
    %v217 = vmul.f32 %v82, %v201
    %v218 = vmul.f32 %v83, %v202
    %v219 = vmul.f32 %v84, %v203
    %v220 = vmul.f32 %v85, %v204
    %v221 = vmul.f32 %v86, %v205
    %v222 = vmul.f32 %v87, %v206
    %v223 = vadd.f32 %v56, %v207
    %v224 = vadd.f32 %v57, %v208
    %v225 = vadd.f32 %v58, %v209
    %v226 = vadd.f32 %v59, %v210
    %v227 = vadd.f32 %v60, %v211
    %v228 = vadd.f32 %v61, %v212
    %v229 = vadd.f32 %v62, %v213
    %v230 = vadd.f32 %v63, %v214
    %v231 = vadd.f32 %v64, %v215
    %v232 = vadd.f32 %v65, %v216
    %v233 = vadd.f32 %v66, %v217
    %v234 = vadd.f32 %v67, %v218
    %v235 = vadd.f32 %v68, %v219
    %v236 = vadd.f32 %v69, %v220
    %v237 = vadd.f32 %v70, %v221
    %v238 = vadd.f32 %v71, %v222
    %v239 = vld [vmem:[#allocation2] sm:$0xff]
    %v240 = vld [vmem:[%s5] sm:$0x1]
    %v241 = vld [vmem:[%s6] sm:$0x1]
    %v242 = vld [vmem:[%s7] sm:$0x1]
    %v243 = vmul.f32 %v241, %v242
    %v244 = vadd.f32 %v240, %v243
    %v246 = vlaneseq
    %v247 = vshrl.u32 %v246, 7
    %v248 = vsub.s32 0, %v247
    %v249 = vrot.slane %v244, %v248
    %251 = vmatprep.subr.mxu0 0.0
    %252 = vmatpush1.msra.mxu0 %v223
    %253 = vmatprep.subr.mxu0 0.0
    %254 = vmatpush1.msra.mxu0 %v224
    %255 = vmatprep.subr.mxu0 0.0
    %256 = vmatpush1.msra.mxu0 %v225
    %257 = vmatprep.subr.mxu0 0.0
    %258 = vmatpush1.msra.mxu0 %v226
    %259 = vmatprep.subr.mxu0 0.0
    %260 = vmatpush1.msra.mxu0 %v227
    %261 = vmatprep.subr.mxu0 0.0
    %262 = vmatpush1.msra.mxu0 %v228
    %263 = vmatprep.subr.mxu0 0.0
    %264 = vmatpush1.msra.mxu0 %v229
    %265 = vmatprep.subr.mxu0 0.0
    %266 = vmatpush1.msra.mxu0 %v230
    %267 = vmatprep.subr.mxu0 0.0
    %268 = vmatpush1.msra.mxu0 %v231
    %269 = vmatprep.subr.mxu0 0.0
    %270 = vmatpush1.msra.mxu0 %v232
    %271 = vmatprep.subr.mxu0 0.0
    %272 = vmatpush1.msra.mxu0 %v233
    %273 = vmatprep.subr.mxu0 0.0
    %274 = vmatpush1.msra.mxu0 %v234
    %275 = vmatprep.subr.mxu0 0.0
    %276 = vmatpush1.msra.mxu0 %v235
    %277 = vmatprep.subr.mxu0 0.0
    %278 = vmatpush1.msra.mxu0 %v236
    %279 = vmatprep.subr.mxu0 0.0
    %280 = vmatpush1.msra.mxu0 %v237
    %281 = vmatprep.subr.mxu0 0.0
    %282 = vmatpush1.msra.mxu0 %v238
    %283 = vmatprep.subr.mxu0 0.0
    %284 = vmatpush1.msra.mxu0 0.0
    %285 = vmatprep.subr.mxu0 0.0
    %286 = vmatpush1.msra.mxu0 0.0
    %287 = vmatprep.subr.mxu0 0.0
    %288 = vmatpush1.msra.mxu0 0.0
    %289 = vmatprep.subr.mxu0 0.0
    %290 = vmatpush1.msra.mxu0 0.0
    %291 = vmatprep.subr.mxu0 0.0
    %292 = vmatpush1.msra.mxu0 0.0
    %293 = vmatprep.subr.mxu0 0.0
    %294 = vmatpush1.msra.mxu0 0.0
    %295 = vmatprep.subr.mxu0 0.0
    %296 = vmatpush1.msra.mxu0 0.0
    %297 = vmatprep.subr.mxu0 0.0
    %298 = vmatpush1.msra.mxu0 0.0
    %299 = vmatprep.subr.mxu0 0.0
    %300 = vmatpush1.msra.mxu0 0.0
    %301 = vmatprep.subr.mxu0 0.0
    %302 = vmatpush1.msra.mxu0 0.0
    %303 = vmatprep.subr.mxu0 0.0
    %304 = vmatpush1.msra.mxu0 0.0
    %305 = vmatprep.subr.mxu0 0.0
    %306 = vmatpush1.msra.mxu0 0.0
    %307 = vmatprep.subr.mxu0 0.0
    %308 = vmatpush1.msra.mxu0 0.0
    %309 = vmatprep.subr.mxu0 0.0
    %310 = vmatpush1.msra.mxu0 0.0
    %311 = vmatprep.subr.mxu0 0.0
    %312 = vmatpush1.msra.mxu0 0.0
    %313 = vmatprep.subr.mxu0 0.0
    %314 = vmatpush1.msra.mxu0 0.0
    %315 = vmatprep.mubr.f32.mxu0 0.0
    %316 = vmatmul.mubr.f32.gmra.mrb[0].mxu0 %v239
    %v317 = vpop.f32.mrb[0].mxu0
    %v318 = vadd.f32 %v249, %v317
    %v319 = vpop.f32.mrb[0].mxu0
    %320 = vdwg.mxu0
    %321 = vst [vmem:[#allocation7] sm:$0xff] %v318
    // Predicated region
    $region42: #{tpu_custom_call.1} parent=1 // pred_check
      _
    $region43: #{tpu_custom_call.1} parent=1 // pred_check_branch
      %323 = sbr.rel (0) target = $region45
    $region44: #{tpu_custom_call.1} parent=1 // pred_region
      %s325 = ssub.s32 128, 128
      %326 = vsyncadd [#allocation4], %s325
      %s328 = sshll.u32 [#allocation7], 4
      %s329 = int_to_ptr.vmem [resolvable:$true] %s328
      %331 = dma.vmem_to_hbm [thread:$0]  %s329, 128, %s8, [#allocation4]
    $region45: #{tpu_custom_call.1} parent=1 // pred_fallthru
      _
    // Predicated region
    $region46: #{tpu_custom_call.1} parent=1 // pred_check
      _
    $region47: #{tpu_custom_call.1} parent=1 // pred_check_branch
      %333 = sbr.rel (0) target = $region49
    $region48: #{tpu_custom_call.1} parent=1 // pred_region
      %334 = dma.done [#allocation4], 128
    $region49: #{tpu_custom_call.1} parent=1 // pred_fallthru
      _
    %335 = vsyncpa [#allocation3], 1
    %336 = vsyncpa [#allocation6], 1
    %337 = vsyncpa [#allocation4], 1

</llo_original>
